<compile_context>
chip_gen: v7x
topology: tpu7x:2x2x1
jax: 0.10.0
libtpu: 0.0.40
codegen_flags: <defaults>
</compile_context>

<pallas_src>
import functools

import jax
import jax.numpy as jnp
from jax.experimental import pallas as pl
from jax.experimental.pallas import tpu as pltpu


def _round_up(x, m):
    return (x + m - 1) // m * m


# ---------------------------------------------------------------------------
# Kernel 1: head-batched projection + packed attention logits.
#   feat = bf16(x) @ bf16(W_all)            (T, H*Fout)  f32 acc -> stored bf16
#   eler = bf16(feat) @ bf16([A_l | A_r])   (T, 2H)      columns: el | er
# ---------------------------------------------------------------------------
def _proj_kernel(x_ref, w_ref, att_ref, feat_ref, eler_ref):
    feat = jnp.dot(x_ref[...], w_ref[...], preferred_element_type=jnp.float32)
    feat_b = feat.astype(jnp.bfloat16)
    eler = jnp.dot(feat_b, att_ref[...], preferred_element_type=jnp.float32)
    feat_ref[...] = feat_b
    eler_ref[...] = eler


# ---------------------------------------------------------------------------
# Kernel 2: per dst-row-tile masked softmax + aggregation, all heads fused.
# Output block is lane-dense (T, H*Fout) == torch flatten(1) layout.
# ---------------------------------------------------------------------------
def _attn_kernel(er_ref, elT_ref, feat_ref, adj_ref, out_ref, *,
                 num_heads, f_out, negative_slope, apply_elu):
    mask = adj_ref[...].astype(jnp.float32) > 0.0      # (T, Np) from int8 adj
    feat = feat_ref[...]                               # (Np, H*Fout) bf16
    er = er_ref[...]                                   # (T, H)  f32 (dst tile)
    elT = elT_ref[...]                                 # (H, Np) f32 (all src)

    for h in range(num_heads):                         # small static unroll
        e = er[:, h:h + 1] + elT[h:h + 1, :]           # (T, Np): e[i, j]
        e = jnp.where(e > 0, e, negative_slope * e)    # leaky ReLU
        e = jnp.where(mask, e, -1e30)
        e = e - jnp.max(e, axis=1, keepdims=True)
        p = jnp.where(mask, jnp.exp(e), 0.0)
        # Guard rows with no in-edges (e.g. padded rows) against 1/0.
        denom = jnp.maximum(jnp.sum(p, axis=1, keepdims=True), 1e-30)
        alpha = p * pl.reciprocal(denom, approx=True)
        r = jnp.dot(alpha.astype(jnp.bfloat16),
                    feat[:, h * f_out:(h + 1) * f_out],
                    preferred_element_type=jnp.float32)        # (T, Fout)
        if apply_elu:
            r = jnp.where(r > 0, r, jnp.expm1(r))              # ELU
        out_ref[:, h * f_out:(h + 1) * f_out] = r


def gat_conv(x, adj_i8, W, a_l, a_r, *, negative_slope=0.2, apply_elu=False,
             block_dst=256):
    """One GATConv layer.  Returns lane-dense (N, H*Fout) == torch flatten(1)."""
    N, Fin = x.shape
    H, Fin2, Fout = W.shape
    assert Fin2 == Fin
    HF = H * Fout

    # Destination-row tile; pad N so the grid divides evenly (sublane rule).
    T = block_dst if N >= block_dst else _round_up(N, 8)
    Np = _round_up(N, T)
    if Np != N:
        x = jnp.pad(x, ((0, Np - N), (0, 0)))
        adj_i8 = jnp.pad(adj_i8, ((0, Np - N), (0, Np - N)))
    n_tiles = Np // T

    # Head-batched weights: (Fin, H*Fout) so one matmul projects every head.
    Wp = jnp.transpose(W, (1, 0, 2)).reshape(Fin, HF).astype(jnp.bfloat16)
    # Block-diagonal packing of a_l / a_r: feat @ att -> (el | er) per head.
    eye = jnp.eye(H, dtype=jnp.float32)
    A_l = (a_l[:, :, None] * eye[:, None, :]).reshape(HF, H)
    A_r = (a_r[:, :, None] * eye[:, None, :]).reshape(HF, H)
    att = jnp.concatenate([A_l, A_r], axis=1).astype(jnp.bfloat16)   # (HF, 2H)

    xb = x.astype(jnp.bfloat16)

    feat, eler = pl.pallas_call(
        _proj_kernel,
        out_shape=(jax.ShapeDtypeStruct((Np, HF), jnp.bfloat16),
                   jax.ShapeDtypeStruct((Np, 2 * H), jnp.float32)),
        grid=(n_tiles,),
        in_specs=[
            pl.BlockSpec((T, Fin), lambda i: (i, 0)),        # x row tile
            pl.BlockSpec((Fin, HF), lambda i: (0, 0)),       # packed W
            pl.BlockSpec((HF, 2 * H), lambda i: (0, 0)),     # packed [a_l|a_r]
        ],
        out_specs=(pl.BlockSpec((T, HF), lambda i: (i, 0)),
                   pl.BlockSpec((T, 2 * H), lambda i: (i, 0))),
        compiler_params=pltpu.CompilerParams(
            dimension_semantics=("parallel",),
            vmem_limit_bytes=48 * 1024 * 1024),
        cost_estimate=pl.CostEstimate(
            flops=int(2 * Np * Fin * HF + 2 * Np * HF * 2 * H),
            transcendentals=0,
            bytes_accessed=int(Np * Fin * 2 + Fin * HF * 2
                               + Np * HF * 2 + Np * 2 * H * 4)),
    )(xb, Wp, att)

    # Tiny glue: split logits and present el as an (H, Np) row per head.
    el = eler[:, :H]
    er = eler[:, H:]
    elT = jnp.transpose(el)                      # (H, Np)

    kernel = functools.partial(
        _attn_kernel, num_heads=H, f_out=Fout,
        negative_slope=negative_slope, apply_elu=apply_elu)

    out = pl.pallas_call(
        kernel,
        out_shape=jax.ShapeDtypeStruct((Np, HF), jnp.float32),
        grid=(n_tiles,),
        in_specs=[
            pl.BlockSpec((T, H), lambda i: (i, 0)),          # er (dst tile)
            pl.BlockSpec((H, Np), lambda i: (0, 0)),         # el^T (all src)
            pl.BlockSpec((Np, HF), lambda i: (0, 0)),        # feat (all src)
            pl.BlockSpec((T, Np), lambda i: (i, 0)),         # adjacency tile i8
        ],
        out_specs=pl.BlockSpec((T, HF), lambda i: (i, 0)),
        compiler_params=pltpu.CompilerParams(
            dimension_semantics=("parallel",),
            vmem_limit_bytes=48 * 1024 * 1024),
        cost_estimate=pl.CostEstimate(
            flops=int(2 * H * Np * Np * Fout + 8 * H * Np * Np),
            transcendentals=int(H * Np * Np + Np * HF),
            bytes_accessed=int(Np * Np + Np * HF * 2 + Np * HF * 4
                               + Np * 3 * H * 4)),
    )(er, elT, feat, adj_i8)

    return out[:N]                               # strip row padding


class GATPallas:
    """Mirrors the PyTorch GAT module: num_layers + 1 GATConv layers."""

    def __init__(self, key, num_layers, in_dim, num_hidden, num_classes, heads,
                 negative_slope=0.2):
        assert num_layers >= 1
        assert len(heads) == num_layers + 1
        self.num_layers = num_layers
        self.negative_slope = negative_slope

        layer_dims = [(in_dim, num_hidden, heads[0])]
        for l in range(1, num_layers):
            layer_dims.append((num_hidden * heads[l - 1], num_hidden, heads[l]))
        layer_dims.append((num_hidden * heads[-2], num_classes, heads[-1]))

        self.params = []
        for (fin, fout, h) in layer_dims:
            key, kw, kl, kr = jax.random.split(key, 4)
            w_std = (2.0 / (fin + fout)) ** 0.5
            W = w_std * jax.random.normal(kw, (h, fin, fout), jnp.float32)
            a_std = (2.0 / (fout + 1)) ** 0.5
            a_l = a_std * jax.random.normal(kl, (h, fout), jnp.float32)
            a_r = a_std * jax.random.normal(kr, (h, fout), jnp.float32)
            self.params.append((W, a_l, a_r))

    def __call__(self, inputs, adj):
        adj_i8 = (adj > 0).astype(jnp.int8)      # int8 adjacency in HBM
        h = inputs
        for l in range(self.num_layers):
            W, a_l, a_r = self.params[l]
            # Output already (N, H*F) lane-dense == torch flatten(1).
            h = gat_conv(h, adj_i8, W, a_l, a_r,
                         negative_slope=self.negative_slope, apply_elu=True)
        W, a_l, a_r = self.params[-1]
        out = gat_conv(h, adj_i8, W, a_l, a_r,
                       negative_slope=self.negative_slope, apply_elu=False)
        Hh, C = W.shape[0], W.shape[2]
        return out.reshape(out.shape[0], Hh, C).mean(axis=1)   # torch .mean(1)


# -------- pure-JAX reference (same math & dtype choices) for correctness -----
def _gat_conv_ref(x, adj, W, a_l, a_r, negative_slope, apply_elu):
    xb = x.astype(jnp.bfloat16)
    outs = []
    for h in range(W.shape[0]):
        feat32 = jnp.dot(xb, W[h].astype(jnp.bfloat16),
                         preferred_element_type=jnp.float32)
        featb = feat32.astype(jnp.bfloat16)
        el = jnp.dot(featb, a_l[h].astype(jnp.bfloat16),
                     preferred_element_type=jnp.float32)
        er = jnp.dot(featb, a_r[h].astype(jnp.bfloat16),
                     preferred_element_type=jnp.float32)
        e = er[:, None] + el[None, :]
        e = jnp.where(e > 0, e, negative_slope * e)
        mask = adj > 0
        e = jnp.where(mask, e, -1e30)
        e = e - e.max(axis=1, keepdims=True)
        p = jnp.where(mask, jnp.exp(e), 0.0)
        alpha = p / jnp.maximum(p.sum(axis=1, keepdims=True), 1e-30)
        r = jnp.dot(alpha.astype(jnp.bfloat16), featb,
                    preferred_element_type=jnp.float32)
        if apply_elu:
            r = jnp.where(r > 0, r, jnp.expm1(r))
        outs.append(r)
    return jnp.concatenate(outs, axis=1)         # (N, H*Fout) == flatten(1)


def _forward_ref(model, inputs, adj):
    h = inputs
    for l in range(model.num_layers):
        W, a_l, a_r = model.params[l]
        h = _gat_conv_ref(h, adj, W, a_l, a_r, model.negative_slope, True)
    W, a_l, a_r = model.params[-1]
    out = _gat_conv_ref(h, adj, W, a_l, a_r, model.negative_slope, False)
    Hh, C = W.shape[0], W.shape[2]
    return out.reshape(out.shape[0], Hh, C).mean(axis=1)


if __name__ == "__main__":
    key = jax.random.PRNGKey(0)
    k_feat, k_params = jax.random.split(key)

    # Small graph: 16 nodes, ring topology + self-loops, dense {0,1} adjacency.
    N, in_dim, num_hidden, num_classes = 16, 16, 16, 8
    num_layers, heads = 2, [2, 2, 1]

    idx = jnp.arange(N)
    adj = jnp.zeros((N, N), jnp.float32)
    adj = adj.at[idx, idx].set(1.0)
    adj = adj.at[idx, (idx + 1) % N].set(1.0)
    adj = adj.at[idx, (idx - 1) % N].set(1.0)

    inputs = jax.random.normal(k_feat, (N, in_dim), jnp.float32)

    model = GATPallas(k_params, num_layers, in_dim, num_hidden, num_classes, heads)

    logits = jax.block_until_ready(model(inputs, adj))
    ref = jax.block_until_ready(_forward_ref(model, inputs, adj))

    assert logits.shape == (N, num_classes)
    assert jnp.allclose(logits, ref, atol=1e-2, rtol=1e-2), "mismatch vs reference"

    print("KERNEL_OK")
</pallas_src>

<mosaic_0001>
module attributes {stable_mosaic.version = 11 : i64} {
  func.func @_proj_kernel(%arg0: i32, %arg1: memref<16x16xbf16, #tpu.memory_space<vmem>>, %arg2: memref<16x32xbf16, #tpu.memory_space<vmem>>, %arg3: memref<32x4xbf16, #tpu.memory_space<vmem>>, %arg4: memref<16x32xbf16, #tpu.memory_space<vmem>>, %arg5: memref<16x4xf32, #tpu.memory_space<vmem>>) attributes {dimension_semantics = [#tpu.dimension_semantics<parallel>], iteration_bounds = array<i64: 1>, scalar_prefetch = 0 : i64, scratch_operands = 0 : i64, tpu.core_type = #tpu.core_type<tc>, window_params = [{transform_indices = @transform_0, window_bounds = array<i64: 16, 16>}, {pipeline_mode = #tpu.pipeline_mode<synchronous>, transform_indices = @transform_1, window_bounds = array<i64: 16, 32>}, {pipeline_mode = #tpu.pipeline_mode<synchronous>, transform_indices = @transform_2, window_bounds = array<i64: 32, 4>}, {transform_indices = @transform_3, window_bounds = array<i64: 16, 32>}, {transform_indices = @transform_4, window_bounds = array<i64: 16, 4>}]} {
    %c0 = arith.constant 0 : index
    %c0_0 = arith.constant 0 : index
    %0 = vector.load %arg1[%c0, %c0_0] : memref<16x16xbf16, #tpu.memory_space<vmem>>, vector<16x16xbf16>
    %c0_1 = arith.constant 0 : index
    %c0_2 = arith.constant 0 : index
    %1 = vector.load %arg2[%c0_1, %c0_2] : memref<16x32xbf16, #tpu.memory_space<vmem>>, vector<16x32xbf16>
    %cst = arith.constant dense<0.000000e+00> : vector<16x32xf32>
    %2 = tpu.matmul %0, %1, %cst {dimension_numbers = #tpu.dot_dimension_numbers<[1], [0], [0], [1], [0, 0, 1, 1], [], []>} : vector<16x16xbf16>, vector<16x32xbf16>, vector<16x32xf32> -> vector<16x32xf32>
    %3 = arith.truncf %2 : vector<16x32xf32> to vector<16x32xbf16>
    %c0_3 = arith.constant 0 : index
    %c0_4 = arith.constant 0 : index
    %4 = vector.load %arg3[%c0_3, %c0_4] : memref<32x4xbf16, #tpu.memory_space<vmem>>, vector<32x4xbf16>
    %cst_5 = arith.constant dense<0.000000e+00> : vector<16x4xf32>
    %5 = tpu.matmul %3, %4, %cst_5 {dimension_numbers = #tpu.dot_dimension_numbers<[1], [0], [0], [1], [0, 0, 1, 1], [], []>} : vector<16x32xbf16>, vector<32x4xbf16>, vector<16x4xf32> -> vector<16x4xf32>
    %c0_6 = arith.constant 0 : index
    %c0_7 = arith.constant 0 : index
    %6 = vector.load %arg4[%c0_6, %c0_7] : memref<16x32xbf16, #tpu.memory_space<vmem>>, vector<16x32xbf16>
    tpu.vector_store %arg4[%c0_6, %c0_7], %3 {strides = array<i32>} : memref<16x32xbf16, #tpu.memory_space<vmem>>, vector<16x32xbf16>,
    %c0_8 = arith.constant 0 : index
    %c0_9 = arith.constant 0 : index
    %7 = vector.load %arg5[%c0_8, %c0_9] : memref<16x4xf32, #tpu.memory_space<vmem>>, vector<16x4xf32>
    tpu.vector_store %arg5[%c0_8, %c0_9], %5 {strides = array<i32>} : memref<16x4xf32, #tpu.memory_space<vmem>>, vector<16x4xf32>,
    return
  }
  func.func @transform_0(%arg0: i32) -> (i32, i32) {
    %c0_i32 = arith.constant 0 : i32
    %c0_i32_0 = arith.constant 0 : i32
    return %arg0, %c0_i32 : i32, i32
  }
  func.func @transform_1(%arg0: i32) -> (i32, i32) {
    %c0_i32 = arith.constant 0 : i32
    %c0_i32_0 = arith.constant 0 : i32
    %c0_i32_1 = arith.constant 0 : i32
    return %c0_i32, %c0_i32_0 : i32, i32
  }
  func.func @transform_2(%arg0: i32) -> (i32, i32) {
    %c0_i32 = arith.constant 0 : i32
    %c0_i32_0 = arith.constant 0 : i32
    %c0_i32_1 = arith.constant 0 : i32
    return %c0_i32, %c0_i32_0 : i32, i32
  }
  func.func @transform_3(%arg0: i32) -> (i32, i32) {
    %c0_i32 = arith.constant 0 : i32
    %c0_i32_0 = arith.constant 0 : i32
    return %arg0, %c0_i32 : i32, i32
  }
  func.func @transform_4(%arg0: i32) -> (i32, i32) {
    %c0_i32 = arith.constant 0 : i32
    %c0_i32_0 = arith.constant 0 : i32
    return %arg0, %c0_i32 : i32, i32
  }
}

</mosaic_0001>

<llo_original>
// kernel: tpu_custom_call.1
$region0: #{tpu_custom_call.1}
  #allocation0 [shape = 'u32[]', space=smem, size = 0x4, offset = 0x4, fixed_abs, tag = 'smem constant byte address 0x4 - core index']
  #allocation1 [shape = 'u32[144,128]{1,0:T(1,128)}', space=vmem, size = 0x12000, scoped, tag = 'internal scratch']
  %s0 = inlined_call_operand.vmem [shape: bf16[16,16], index: 0, kind: input, shape index: {}]
  %s1 = inlined_call_operand.vmem [shape: bf16[16,32], index: 1, kind: input, shape index: {}]
  %s2 = inlined_call_operand.vmem [shape: bf16[32,4], index: 2, kind: input, shape index: {}]
  %s3 = inlined_call_operand.hbm [shape: bf16[16,32], index: 3, kind: output, shape index: {0}]
  %s4 = inlined_call_operand.vmem [shape: f32[16,4], index: 4, kind: output, shape index: {1}]
  %5 = xla_tuple %s3, %s4
  %s6 = sld [smem:[#allocation0]]
  $region30: #{tpu_custom_call.1} parent=0
    _
  %s8 = ssub.s32 1, %s6
  %s9 = scalar_select 0, %s8, %s6
  $region1: #{tpu_custom_call.1} parent=0
    #allocation2 [shape = 'u8[4096]{0}', space=vmem, size = 0x1000, scoped, tag = 'output window, operand 0, single buffered']
    #allocation3 [shape = 's32[1]{0}', space=sflag, size = 0x4, scoped, tag = 'scoped memory for tpu_custom_call.1']
    %10 = vsyncpa [#allocation3], 0
    // Predicated region
    $region2: #{tpu_custom_call.1} parent=1 // pred_check
      _
    $region3: #{tpu_custom_call.1} parent=1 // pred_check_branch
      %12 = sbr.rel (0) target = $region5
    $region4: #{tpu_custom_call.1} parent=1 // pred_region
      _
    $region5: #{tpu_custom_call.1} parent=1 // pred_fallthru
      _
    // Predicated region
    $region6: #{tpu_custom_call.1} parent=1 // pred_check
      _
    $region7: #{tpu_custom_call.1} parent=1 // pred_check_branch
      %14 = sbr.rel (0) target = $region9
    $region8: #{tpu_custom_call.1} parent=1 // pred_region
      _
    $region9: #{tpu_custom_call.1} parent=1 // pred_fallthru
      _
    // Predicated region
    $region10: #{tpu_custom_call.1} parent=1 // pred_check
      _
    $region11: #{tpu_custom_call.1} parent=1 // pred_check_branch
      %16 = sbr.rel (0) target = $region13
    $region12: #{tpu_custom_call.1} parent=1 // pred_region
      _
    $region13: #{tpu_custom_call.1} parent=1 // pred_fallthru
      _
    %v18 = vld [vmem:[%s0] sm:$0xf]
    %v19 = vld [vmem:[%s0 + $0x4] sm:$0xf]
    %v20 = vld [vmem:[%s1] sm:$0xf]
    %v21 = vld [vmem:[%s1 + $0x4] sm:$0xf]
    %v24 = vunpack.c.l.b16 %v18
    %v25 = vunpack.c.l.b16 %v19
    %v26 = vpack.c.b16 %v25, %v24
    %v29 = vunpack.c.l.b16 %v20
    %v30 = vunpack.c.l.b16 %v21
    %v31 = vpack.c.b16 %v30, %v29
    %vm33 = vcmask 130048
    %v35 = vsel %vm33, %v26, 0
    %37 = vmatprep.subr.bf16.mxu0 0
    %38 = vmatpush1.bf16.msra.mxu0 %v31
    %39 = vmatprep.subr.bf16.mxu0 0
    %40 = vmatpush1.bf16.msra.mxu0 0
    %41 = vmatprep.subr.bf16.mxu0 0
    %42 = vmatpush1.bf16.msra.mxu0 0
    %43 = vmatprep.subr.bf16.mxu0 0
    %44 = vmatpush1.bf16.msra.mxu0 0
    %45 = vmatprep.subr.bf16.mxu0 0
    %46 = vmatpush1.bf16.msra.mxu0 0
    %47 = vmatprep.subr.bf16.mxu0 0
    %48 = vmatpush1.bf16.msra.mxu0 0
    %49 = vmatprep.subr.bf16.mxu0 0
    %50 = vmatpush1.bf16.msra.mxu0 0
    %51 = vmatprep.subr.bf16.mxu0 0
    %52 = vmatpush1.bf16.msra.mxu0 0
    %53 = vmatprep.subr.bf16.mxu0 0
    %54 = vmatpush1.bf16.msra.mxu0 0
    %55 = vmatprep.subr.bf16.mxu0 0
    %56 = vmatpush1.bf16.msra.mxu0 0
    %57 = vmatprep.subr.bf16.mxu0 0
    %58 = vmatpush1.bf16.msra.mxu0 0
    %59 = vmatprep.subr.bf16.mxu0 0
    %60 = vmatpush1.bf16.msra.mxu0 0
    %61 = vmatprep.subr.bf16.mxu0 0
    %62 = vmatpush1.bf16.msra.mxu0 0
    %63 = vmatprep.subr.bf16.mxu0 0
    %64 = vmatpush1.bf16.msra.mxu0 0
    %65 = vmatprep.subr.bf16.mxu0 0
    %66 = vmatpush1.bf16.msra.mxu0 0
    %67 = vmatprep.subr.bf16.mxu0 0
    %68 = vmatpush1.bf16.msra.mxu0 0
    %69 = vmatprep.mubr.bf16.mxu0 0
    %70 = vmatmul.mubr.bf16.gmra.mrb[0].mxu0 %v35
    %v71 = vpop.f32.mrb[0].mxu0
    %v72 = vadd.f32 0.0, %v71
    %v73 = vpop.f32.mrb[0].mxu0
    %v74 = vpop.f32.mrb[0].mxu0
    %v75 = vadd.f32 0.0, %v74
    %v76 = vpop.f32.mrb[0].mxu0
    %77 = vdwg.mxu0
    %v78 = vpack.c.bf16 %v75, %v72
    %v79 = vld [vmem:[%s2] sm:$0xf]
    %v80 = vld [vmem:[%s2 + $0x4] sm:$0xf]
    %v81 = vld [vmem:[%s2 + $0x8] sm:$0xf]
    %v82 = vld [vmem:[%s2 + $0xc] sm:$0xf]
    %v87 = vunpack.c.l.b16 %v79
    %v88 = vunpack.c.l.b16 %v80
    %v89 = vunpack.c.l.b16 %v81
    %v90 = vunpack.c.l.b16 %v82
    %v91 = vpack.c.b16 %v88, %v87
    %v92 = vpack.c.b16 %v90, %v89
    %vm95 = vcmask 261120
    %v97 = vsel %vm95, %v78, 0
    %99 = vmatprep.subr.bf16.mxu0 0
    %100 = vmatpush1.bf16.msra.mxu0 %v91
    %101 = vmatprep.subr.bf16.mxu0 0
    %102 = vmatpush1.bf16.msra.mxu0 %v92
    %103 = vmatprep.subr.bf16.mxu0 0
    %104 = vmatpush1.bf16.msra.mxu0 0
    %105 = vmatprep.subr.bf16.mxu0 0
    %106 = vmatpush1.bf16.msra.mxu0 0
    %107 = vmatprep.subr.bf16.mxu0 0
    %108 = vmatpush1.bf16.msra.mxu0 0
    %109 = vmatprep.subr.bf16.mxu0 0
    %110 = vmatpush1.bf16.msra.mxu0 0
    %111 = vmatprep.subr.bf16.mxu0 0
    %112 = vmatpush1.bf16.msra.mxu0 0
    %113 = vmatprep.subr.bf16.mxu0 0
    %114 = vmatpush1.bf16.msra.mxu0 0
    %115 = vmatprep.subr.bf16.mxu0 0
    %116 = vmatpush1.bf16.msra.mxu0 0
    %117 = vmatprep.subr.bf16.mxu0 0
    %118 = vmatpush1.bf16.msra.mxu0 0
    %119 = vmatprep.subr.bf16.mxu0 0
    %120 = vmatpush1.bf16.msra.mxu0 0
    %121 = vmatprep.subr.bf16.mxu0 0
    %122 = vmatpush1.bf16.msra.mxu0 0
    %123 = vmatprep.subr.bf16.mxu0 0
    %124 = vmatpush1.bf16.msra.mxu0 0
    %125 = vmatprep.subr.bf16.mxu0 0
    %126 = vmatpush1.bf16.msra.mxu0 0
    %127 = vmatprep.subr.bf16.mxu0 0
    %128 = vmatpush1.bf16.msra.mxu0 0
    %129 = vmatprep.subr.bf16.mxu0 0
    %130 = vmatpush1.bf16.msra.mxu0 0
    %131 = vmatprep.mubr.bf16.mxu0 0
    %132 = vmatmul.mubr.bf16.gmra.mrb[0].mxu0 %v97
    %v133 = vpop.f32.mrb[0].mxu0
    %v134 = vadd.f32 0.0, %v133
    %v135 = vpop.f32.mrb[0].mxu0
    %v136 = vpop.f32.mrb[0].mxu0
    %v137 = vadd.f32 0.0, %v136
    %v138 = vpop.f32.mrb[0].mxu0
    %139 = vdwg.mxu0
    %v141 = vunpack.c.l.b16 %v78
    %v142 = vunpack.c.h.b16 %v78
    %v143 = vpack.c.b16 %v141, %v141
    %v144 = vpack.c.b16 %v142, %v142
    %vm147 = vcmask 257024
    %148 = vst.msk [vmem:[#allocation2] sm:$0xf] %vm147, %v143
    %149 = vst.msk [vmem:[#allocation2 + $0x4] sm:$0xf] %vm147, %v144
    %vm150 = vcmask 31744
    %151 = vst.msk [vmem:[%s4] sm:$0xff] %vm150, %v134
    %152 = vst.msk [vmem:[%s4 + $0x8] sm:$0xff] %vm150, %v137
    // Predicated region
    $region14: #{tpu_custom_call.1} parent=1 // pred_check
      _
    $region15: #{tpu_custom_call.1} parent=1 // pred_check_branch
      %154 = sbr.rel (0) target = $region17
    $region16: #{tpu_custom_call.1} parent=1 // pred_region
      %s156 = ssub.s32 128, 128
      %157 = vsyncadd [#allocation3], %s156
      %s158 = sshll.u32 [#allocation2], 4
      %s159 = int_to_ptr.vmem [resolvable:$true] %s158
      %164 = dma.vmem_to_hbm [thread:$0]  %s159, 128, %s3, [#allocation3], 64, 64, 4
    $region17: #{tpu_custom_call.1} parent=1 // pred_fallthru
      _
    // Predicated region
    $region18: #{tpu_custom_call.1} parent=1 // pred_check
      _
    $region19: #{tpu_custom_call.1} parent=1 // pred_check_branch
      %166 = sbr.rel (0) target = $region21
    $region20: #{tpu_custom_call.1} parent=1 // pred_region
      _
    $region21: #{tpu_custom_call.1} parent=1 // pred_fallthru
      _
    // Predicated region
    $region22: #{tpu_custom_call.1} parent=1 // pred_check
      _
    $region23: #{tpu_custom_call.1} parent=1 // pred_check_branch
      %168 = sbr.rel (0) target = $region25
    $region24: #{tpu_custom_call.1} parent=1 // pred_region
      %169 = dma.done [#allocation3], 128
    $region25: #{tpu_custom_call.1} parent=1 // pred_fallthru
      _
    // Predicated region
    $region26: #{tpu_custom_call.1} parent=1 // pred_check
      _
    $region27: #{tpu_custom_call.1} parent=1 // pred_check_branch
      %171 = sbr.rel (0) target = $region29
    $region28: #{tpu_custom_call.1} parent=1 // pred_region
      _
    $region29: #{tpu_custom_call.1} parent=1 // pred_fallthru
      _
    %172 = vsyncpa [#allocation3], 1

</llo_original>
